<compile_context>
chip_gen: v5e
topology: v5e:2x2
jax: 0.10.0
libtpu: 0.0.40
codegen_flags: <defaults>
</compile_context>

<pallas_src>
import jax
import jax.numpy as jnp
from jax.experimental import pallas as pl
from jax.experimental.pallas import tpu as pltpu

LANES = 128
SUBLANES = 8
MAX_TILE_ROWS = 2048     # 2048 x 128 f32 = 1 MiB per input buffer (x2 inputs x2 bufs = 4 MiB)
NUM_SPLITS = 2           # outer 'parallel' grid axis (2 TCs on v7x; harmless elsewhere)
SENTINEL = -100.0        # exp(-|SENTINEL|) == 0 in f32 -> padded elems contribute 0


def _cdiv(a, b):
    return -(-a // b)


def _dice_bce_kernel(x_ref, y_ref, o_ref):
    """One grid step: stream a (tile_rows, 128) slab of logits/targets and
    accumulate (8, 128) vector partials of [bce, sig*y, sig + y] into the
    VMEM-resident output block for this split."""
    i = pl.program_id(1)

    @pl.when(i == 0)
    def _():
        o_ref[...] = jnp.zeros_like(o_ref)

    x = x_ref[...].astype(jnp.float32)
    y = y_ref[...].astype(jnp.float32)

    # Single EUP exp, reused for both the BCE log-term and the sigmoid.
    e = jnp.exp(-jnp.abs(x))
    # Stable BCE-with-logits: max(x,0) - x*y + log1p(exp(-|x|))
    bce = jnp.maximum(x, 0.0) - x * y + jnp.log1p(e)
    # Stable sigmoid derived from the same exp.
    sig = jnp.where(x >= 0.0, 1.0, e) / (1.0 + e)

    sub = x.shape[0] // SUBLANES

    def fold(v):
        # (tile_rows, 128) -> (8, 128) via VPU adds; no cross-lane work.
        return v.reshape(sub, SUBLANES, LANES).sum(axis=0)

    o_ref[0, 0] += fold(bce)        # sum of per-element BCE
    o_ref[0, 1] += fold(sig * y)    # intersection
    o_ref[0, 2] += fold(sig + y)    # sum(sigmoid(inputs)) + sum(targets)


def dice_bce_loss(inputs, targets, weight=0.5):
    """Pallas TPU implementation of DiceBCELoss.forward.

    inputs, targets: same-shape arrays (e.g. NCHW logits / {0,1} targets).
    Returns a scalar float32 loss.
    """
    assert inputs.shape == targets.shape
    n_elems = int(inputs.size)

    # Keep native dtype (kernel upcasts); only reshape/pad here.
    x = inputs.reshape(-1)
    y = targets.reshape(-1)

    rows = _cdiv(n_elems, LANES)
    rows_per_split = _cdiv(rows, NUM_SPLITS)
    tile_rows = min(MAX_TILE_ROWS, _cdiv(rows_per_split, SUBLANES) * SUBLANES)
    steps = _cdiv(rows_per_split, tile_rows)
    padded_rows = NUM_SPLITS * steps * tile_rows
    padded = padded_rows * LANES
    pad = padded - n_elems
    if pad:
        # Sentinel padding: bce(-100, 0) == 0, sigmoid(-100) == 0, target == 0,
        # so padded elements contribute nothing to any of the three sums.
        x = jnp.pad(x, (0, pad), constant_values=SENTINEL)
        y = jnp.pad(y, (0, pad), constant_values=0)
    x2 = x.reshape(padded_rows, LANES)
    y2 = y.reshape(padded_rows, LANES)

    in_bytes = x2.size * x2.dtype.itemsize + y2.size * y2.dtype.itemsize
    out_bytes = NUM_SPLITS * 3 * SUBLANES * LANES * 4
    cost = pl.CostEstimate(
        flops=14 * n_elems,
        transcendentals=3 * n_elems,
        bytes_accessed=in_bytes + out_bytes,
    )

    partials = pl.pallas_call(
        _dice_bce_kernel,
        out_shape=jax.ShapeDtypeStruct(
            (NUM_SPLITS, 3, SUBLANES, LANES), jnp.float32
        ),
        grid_spec=pltpu.PrefetchScalarGridSpec(
            num_scalar_prefetch=0,
            grid=(NUM_SPLITS, steps),
            in_specs=[
                pl.BlockSpec((tile_rows, LANES), lambda p, i: (p * steps + i, 0)),
                pl.BlockSpec((tile_rows, LANES), lambda p, i: (p * steps + i, 0)),
            ],
            out_specs=pl.BlockSpec(
                (1, 3, SUBLANES, LANES), lambda p, i: (p, 0, 0, 0)
            ),
        ),
        compiler_params=pltpu.CompilerParams(
            dimension_semantics=("parallel", "arbitrary"),
        ),
        cost_estimate=cost,
    )(x2, y2)

    # Tiny finalize on the host/XLA side: combine both splits' vector partials.
    sums = jnp.sum(partials, axis=(0, 2, 3))  # (3,)
    bce_loss = sums[0] / jnp.float32(n_elems)
    dice_loss = 1.0 - (2.0 * sums[1] + 1.0) / (sums[2] + 1.0)
    w = jnp.float32(weight)
    return w * bce_loss + (1.0 - w) * dice_loss


def _reference(inputs, targets, weight=0.5):
    x = inputs.astype(jnp.float32)
    y = targets.astype(jnp.float32)
    bce = jnp.mean(jnp.maximum(x, 0.0) - x * y + jnp.log1p(jnp.exp(-jnp.abs(x))))
    s = jax.nn.sigmoid(x)
    inter = jnp.sum(s * y)
    dice = 1.0 - (2.0 * inter + 1.0) / (jnp.sum(s) + jnp.sum(y) + 1.0)
    return weight * bce + (1.0 - weight) * dice


if __name__ == "__main__":
    key = jax.random.PRNGKey(0)

    ok = True
    # Small NCHW shapes; the second exercises the sentinel-padded ragged tail.
    for shape in [(2, 4, 16, 16), (2, 3, 17, 13)]:
        k1, k2 = jax.random.split(jax.random.fold_in(key, shape[-1]))
        inputs = jax.random.normal(k1, shape, dtype=jnp.float32)
        targets = (jax.random.uniform(k2, shape) > 0.5).astype(jnp.float32)

        loss = dice_bce_loss(inputs, targets, weight=0.5)
        jax.block_until_ready(loss)

        ref = _reference(inputs, targets, weight=0.5)
        if not jnp.allclose(loss, ref, atol=1e-5, rtol=1e-5):
            ok = False
            print("MISMATCH", shape, float(loss), float(ref))

    assert ok
    print("KERNEL_OK")
</pallas_src>

<mosaic_0001>
module attributes {stable_mosaic.version = 11 : i64} {
  func.func @_dice_bce_kernel(%arg0: i32, %arg1: i32, %arg2: memref<8x128xf32, #tpu.memory_space<vmem>>, %arg3: memref<8x128xf32, #tpu.memory_space<vmem>>, %arg4: memref<1x3x8x128xf32, #tpu.memory_space<vmem>>) attributes {dimension_semantics = [#tpu.dimension_semantics<parallel>, #tpu.dimension_semantics<arbitrary>], iteration_bounds = array<i64: 2, 1>, scalar_prefetch = 0 : i64, scratch_operands = 0 : i64, tpu.core_type = #tpu.core_type<tc>, window_params = [{transform_indices = @transform_0, window_bounds = array<i64: 8, 128>}, {transform_indices = @transform_1, window_bounds = array<i64: 8, 128>}, {transform_indices = @transform_2, window_bounds = array<i64: 1, 3, 8, 128>}]} {
    %c0_i32 = arith.constant 0 : i32
    %0 = arith.cmpi eq, %arg1, %c0_i32 : i32
    %1 = arith.extui %0 : i1 to i32
    %c0_i32_0 = arith.constant 0 : i32
    %2 = arith.cmpi ne, %1, %c0_i32_0 : i32
    scf.if %2 {
      %cst_33 = arith.constant 0.000000e+00 : f32
      %48 = vector.broadcast %cst_33 : f32 to vector<1x3x8x128xf32>
      %c0_34 = arith.constant 0 : index
      %c0_35 = arith.constant 0 : index
      %c0_36 = arith.constant 0 : index
      %c0_37 = arith.constant 0 : index
      %49 = vector.load %arg4[%c0_34, %c0_35, %c0_36, %c0_37] : memref<1x3x8x128xf32, #tpu.memory_space<vmem>>, vector<1x3x8x128xf32>
      tpu.vector_store %arg4[%c0_34, %c0_35, %c0_36, %c0_37], %48 {strides = array<i32>} : memref<1x3x8x128xf32, #tpu.memory_space<vmem>>, vector<1x3x8x128xf32>,
    } else {
    }
    %c0 = arith.constant 0 : index
    %c0_1 = arith.constant 0 : index
    %3 = vector.load %arg2[%c0, %c0_1] : memref<8x128xf32, #tpu.memory_space<vmem>>, vector<8x128xf32>
    %c0_2 = arith.constant 0 : index
    %c0_3 = arith.constant 0 : index
    %4 = vector.load %arg3[%c0_2, %c0_3] : memref<8x128xf32, #tpu.memory_space<vmem>>, vector<8x128xf32>
    %5 = math.absf %3 : vector<8x128xf32>
    %cst = arith.constant 0.000000e+00 : f32
    %6 = vector.broadcast %cst : f32 to vector<8x128xf32>
    %7 = arith.subf %6, %5 : vector<8x128xf32>
    %8 = math.exp %7 : vector<8x128xf32>
    %cst_4 = arith.constant 0.000000e+00 : f32
    %9 = vector.broadcast %cst_4 : f32 to vector<8x128xf32>
    %10 = arith.maximumf %3, %9 : vector<8x128xf32>
    %11 = arith.mulf %3, %4 : vector<8x128xf32>
    %12 = arith.subf %10, %11 : vector<8x128xf32>
    %13 = math.log1p %8 : vector<8x128xf32>
    %14 = arith.addf %12, %13 : vector<8x128xf32>
    %cst_5 = arith.constant 0.000000e+00 : f32
    %15 = vector.broadcast %cst_5 : f32 to vector<8x128xf32>
    %16 = arith.cmpf oge, %3, %15 : vector<8x128xf32>
    %cst_6 = arith.constant 1.000000e+00 : f32
    %17 = vector.broadcast %cst_6 : f32 to vector<8x128xf32>
    %18 = arith.select %16, %17, %8 : vector<8x128xi1>, vector<8x128xf32>
    %cst_7 = arith.constant 1.000000e+00 : f32
    %19 = vector.broadcast %cst_7 : f32 to vector<8x128xf32>
    %20 = arith.addf %19, %8 : vector<8x128xf32>
    %21 = arith.divf %18, %20 : vector<8x128xf32>
    %c0_8 = arith.constant 0 : index
    %c0_9 = arith.constant 0 : index
    %c0_10 = arith.constant 0 : index
    %c0_11 = arith.constant 0 : index
    %22 = vector.load %arg4[%c0_8, %c0_9, %c0_10, %c0_11] : memref<1x3x8x128xf32, #tpu.memory_space<vmem>>, vector<1x1x8x128xf32>
    %23 = vector.shape_cast %22 : vector<1x1x8x128xf32> to vector<8x128xf32>
    %24 = vector.shape_cast %14 : vector<8x128xf32> to vector<1x8x128xf32>
    %cst_12 = arith.constant dense<0.000000e+00> : vector<8x128xf32>
    %25 = vector.multi_reduction <add>, %24, %cst_12 [0] : vector<1x8x128xf32> to vector<8x128xf32>
    %26 = arith.addf %23, %25 : vector<8x128xf32>
    %c0_13 = arith.constant 0 : index
    %c0_14 = arith.constant 0 : index
    %c0_15 = arith.constant 0 : index
    %c0_16 = arith.constant 0 : index
    %27 = vector.load %arg4[%c0_13, %c0_14, %c0_15, %c0_16] : memref<1x3x8x128xf32, #tpu.memory_space<vmem>>, vector<1x1x8x128xf32>
    %28 = vector.shape_cast %27 : vector<1x1x8x128xf32> to vector<8x128xf32>
    %29 = vector.shape_cast %26 : vector<8x128xf32> to vector<1x1x8x128xf32>
    tpu.vector_store %arg4[%c0_13, %c0_14, %c0_15, %c0_16], %29 {strides = array<i32>} : memref<1x3x8x128xf32, #tpu.memory_space<vmem>>, vector<1x1x8x128xf32>,
    %c0_17 = arith.constant 0 : index
    %c1 = arith.constant 1 : index
    %c0_18 = arith.constant 0 : index
    %c0_19 = arith.constant 0 : index
    %30 = vector.load %arg4[%c0_17, %c1, %c0_18, %c0_19] : memref<1x3x8x128xf32, #tpu.memory_space<vmem>>, vector<1x1x8x128xf32>
    %31 = vector.shape_cast %30 : vector<1x1x8x128xf32> to vector<8x128xf32>
    %32 = arith.mulf %21, %4 : vector<8x128xf32>
    %33 = vector.shape_cast %32 : vector<8x128xf32> to vector<1x8x128xf32>
    %cst_20 = arith.constant dense<0.000000e+00> : vector<8x128xf32>
    %34 = vector.multi_reduction <add>, %33, %cst_20 [0] : vector<1x8x128xf32> to vector<8x128xf32>
    %35 = arith.addf %31, %34 : vector<8x128xf32>
    %c0_21 = arith.constant 0 : index
    %c1_22 = arith.constant 1 : index
    %c0_23 = arith.constant 0 : index
    %c0_24 = arith.constant 0 : index
    %36 = vector.load %arg4[%c0_21, %c1_22, %c0_23, %c0_24] : memref<1x3x8x128xf32, #tpu.memory_space<vmem>>, vector<1x1x8x128xf32>
    %37 = vector.shape_cast %36 : vector<1x1x8x128xf32> to vector<8x128xf32>
    %38 = vector.shape_cast %35 : vector<8x128xf32> to vector<1x1x8x128xf32>
    tpu.vector_store %arg4[%c0_21, %c1_22, %c0_23, %c0_24], %38 {strides = array<i32>} : memref<1x3x8x128xf32, #tpu.memory_space<vmem>>, vector<1x1x8x128xf32>,
    %c0_25 = arith.constant 0 : index
    %c2 = arith.constant 2 : index
    %c0_26 = arith.constant 0 : index
    %c0_27 = arith.constant 0 : index
    %39 = vector.load %arg4[%c0_25, %c2, %c0_26, %c0_27] : memref<1x3x8x128xf32, #tpu.memory_space<vmem>>, vector<1x1x8x128xf32>
    %40 = vector.shape_cast %39 : vector<1x1x8x128xf32> to vector<8x128xf32>
    %41 = arith.addf %21, %4 : vector<8x128xf32>
    %42 = vector.shape_cast %41 : vector<8x128xf32> to vector<1x8x128xf32>
    %cst_28 = arith.constant dense<0.000000e+00> : vector<8x128xf32>
    %43 = vector.multi_reduction <add>, %42, %cst_28 [0] : vector<1x8x128xf32> to vector<8x128xf32>
    %44 = arith.addf %40, %43 : vector<8x128xf32>
    %c0_29 = arith.constant 0 : index
    %c2_30 = arith.constant 2 : index
    %c0_31 = arith.constant 0 : index
    %c0_32 = arith.constant 0 : index
    %45 = vector.load %arg4[%c0_29, %c2_30, %c0_31, %c0_32] : memref<1x3x8x128xf32, #tpu.memory_space<vmem>>, vector<1x1x8x128xf32>
    %46 = vector.shape_cast %45 : vector<1x1x8x128xf32> to vector<8x128xf32>
    %47 = vector.shape_cast %44 : vector<8x128xf32> to vector<1x1x8x128xf32>
    tpu.vector_store %arg4[%c0_29, %c2_30, %c0_31, %c0_32], %47 {strides = array<i32>} : memref<1x3x8x128xf32, #tpu.memory_space<vmem>>, vector<1x1x8x128xf32>,
    return
  }
  func.func @transform_0(%arg0: i32, %arg1: i32) -> (i32, i32) {
    %c1_i32 = arith.constant 1 : i32
    %0 = arith.muli %arg0, %c1_i32 : i32
    %1 = arith.addi %0, %arg1 : i32
    %c0_i32 = arith.constant 0 : i32
    %c0_i32_0 = arith.constant 0 : i32
    return %1, %c0_i32 : i32, i32
  }
  func.func @transform_1(%arg0: i32, %arg1: i32) -> (i32, i32) {
    %c1_i32 = arith.constant 1 : i32
    %0 = arith.muli %arg0, %c1_i32 : i32
    %1 = arith.addi %0, %arg1 : i32
    %c0_i32 = arith.constant 0 : i32
    %c0_i32_0 = arith.constant 0 : i32
    return %1, %c0_i32 : i32, i32
  }
  func.func @transform_2(%arg0: i32, %arg1: i32) -> (i32, i32, i32, i32) {
    %c0_i32 = arith.constant 0 : i32
    %c0_i32_0 = arith.constant 0 : i32
    %c0_i32_1 = arith.constant 0 : i32
    %c0_i32_2 = arith.constant 0 : i32
    return %arg0, %c0_i32, %c0_i32_0, %c0_i32_1 : i32, i32, i32, i32
  }
}

</mosaic_0001>

<llo_original>
// kernel: tpu_custom_call.1
$region0: #{tpu_custom_call.1}
  #allocation0 [shape = 'u32[]', space=smem, size = 0x4, offset = 0x4, fixed_abs, tag = 'smem constant byte address 0x4 - core index']
  #allocation1 [shape = 'u32[72,128]{1,0:T(1,128)}', space=vmem, size = 0x9000, scoped, tag = 'internal scratch']
  %s0 = inlined_call_operand.hbm [shape: f32[16,128], index: 0, kind: input, shape index: {}]
  %s1 = inlined_call_operand.hbm [shape: f32[16,128], index: 1, kind: input, shape index: {}]
  %s2 = inlined_call_operand.hbm [shape: f32[2,3,8,128], index: 2, kind: output, shape index: {}]
  %s3 = sld [smem:[#allocation0]]
  $region53: #{tpu_custom_call.1} parent=0
    _
  %s5 = ssub.s32 1, %s3
  %s6 = scalar_select 0, %s5, %s3
  $region1: #{tpu_custom_call.1} parent=0
    #allocation2 [shape = 'u8[8192]{0}', space=vmem, size = 0x2000, scoped, tag = 'input window, operand 0']
    #allocation3 [shape = 's32[2]{0}', space=sflag, size = 0x8, scoped, tag = 'scoped memory for tpu_custom_call.1']
    #allocation4 [shape = 's32[2]{0}', space=sflag, size = 0x8, scoped, tag = 'scoped memory for tpu_custom_call.1']
    #allocation5 [shape = 'u8[8192]{0}', space=vmem, size = 0x2000, scoped, tag = 'input window, operand 1']
    #allocation6 [shape = 's32[2]{0}', space=sflag, size = 0x8, scoped, tag = 'scoped memory for tpu_custom_call.1']
    #allocation7 [shape = 'u8[24576]{0}', space=vmem, size = 0x6000, scoped, tag = 'output window, operand 0']
    %7 = vsyncpa [#allocation3], 0
    %s8 = scalar_lea.sflag [#allocation3], 1
    %9 = vsyncpa %s8, 0
    %10 = vsyncpa [#allocation6], 0
    %s11 = scalar_lea.sflag [#allocation6], 1
    %12 = vsyncpa %s11, 0
    %13 = vsyncpa [#allocation4], 0
    %s14 = scalar_lea.sflag [#allocation4], 1
    %15 = vsyncpa %s14, 0
    loop: start=0, step=1, limit=4
    $region2: #{tpu_custom_call.1} parent=1 // loop_pre_header
      _
    $region3: #{tpu_custom_call.1} parent=1 // loop_header
      %s17 = sphi 0, %s21
      %p18 = scmp.ge.s32.totalorder %s17, 4
      %s24 = sphi 0, %s36
      %s25 = sphi 0, %s32
      %s26 = sphi 0, %s24
      %s27 = sphi 0, %s25
      %s28 = sphi 0, %s26
      %s29 = sphi 0, %s27
      %s41 = sphi 0, %s43
      %s44 = sphi 0, %s41
      %s45 = sphi 0, %s44
      %s61 = sphi 0, %s45
      %s69 = sphi 0, %s71
      %s72 = sphi 0, %s69
      %s73 = sphi 0, %s72
      %s89 = sphi 0, %s73
      %s95 = sphi 0, %s97
      %s98 = sphi 0, %s95
      %s99 = sphi 0, %s98
      %s115 = sphi 0, %s99
    $region4: #{tpu_custom_call.1} parent=1 // loop_header_branch
      %20 = sbr.rel (%p18) target = $region8
    $region5: #{tpu_custom_call.1} parent=1 // loop_body
      %s22 = ssub.s32 %s17, 1
      %s23 = ssub.s32 %s17, 2
      %s30 = sadd.s32 1, %s25
      %p31 = scmp.ge.s32.totalorder %s30, 1
      %s32 = scalar_select %p31, 0, %s30
      %s33 = sadd.s32 1, %s24
      %s34 = scalar_select %p31, %s33, %s24
      %p35 = scmp.ge.s32.totalorder %s34, 2
      %s36 = scalar_select %p35, 0, %s34
      %s37 = sadd.s32 %s24, %s25
      %s38 = sadd.s32 %s36, %s32
      %s39 = ssub.s32 %s37, %s38
      %p40 = scmp.eq.s32.totalorder %s39, 0
      %s42 = sadd.s32 %s41, 1
      %s43 = scalar_select %p40, %s41, %s42
      %p46 = pneg %p40
      %p47 = scmp.eq.s32.totalorder %s17, 1
      %p48 = por %p46, %p47
      %p49 = scmp.ne.s32.totalorder %s41, %s44
      %p50 = scmp.eq.s32.totalorder %s17, 0
      %p51 = por %p49, %p50
      %p52 = scmp.ne.s32.totalorder %s41, %s44
      %p53 = scmp.eq.s32.totalorder %s22, 1
      %p54 = por %p52, %p53
      %p55 = scmp.ne.s32.totalorder %s44, %s45
      %p56 = scmp.eq.s32.totalorder %s22, 0
      %p57 = por %p55, %p56
      %p58 = scmp.ne.s32.totalorder %s44, %s45
      %p59 = scmp.eq.s32.totalorder %s23, 1
      %p60 = por %p58, %p59
      %p62 = scmp.ne.s32.totalorder %s45, %s61
      %p63 = scmp.eq.s32.totalorder %s23, 0
      %p64 = por %p62, %p63
      %s65 = sadd.s32 %s24, %s25
      %s66 = sadd.s32 %s36, %s32
      %s67 = ssub.s32 %s65, %s66
      %p68 = scmp.eq.s32.totalorder %s67, 0
      %s70 = sadd.s32 %s69, 1
      %s71 = scalar_select %p68, %s69, %s70
      %p74 = pneg %p68
      %p75 = scmp.eq.s32.totalorder %s17, 1
      %p76 = por %p74, %p75
      %p77 = scmp.ne.s32.totalorder %s69, %s72
      %p78 = scmp.eq.s32.totalorder %s17, 0
      %p79 = por %p77, %p78
      %p80 = scmp.ne.s32.totalorder %s69, %s72
      %p81 = scmp.eq.s32.totalorder %s22, 1
      %p82 = por %p80, %p81
      %p83 = scmp.ne.s32.totalorder %s72, %s73
      %p84 = scmp.eq.s32.totalorder %s22, 0
      %p85 = por %p83, %p84
      %p86 = scmp.ne.s32.totalorder %s72, %s73
      %p87 = scmp.eq.s32.totalorder %s23, 1
      %p88 = por %p86, %p87
      %p90 = scmp.ne.s32.totalorder %s73, %s89
      %p91 = scmp.eq.s32.totalorder %s23, 0
      %p92 = por %p90, %p91
      %s93 = ssub.s32 %s24, %s36
      %p94 = scmp.eq.s32.totalorder %s93, 0
      %s96 = sadd.s32 %s95, 1
      %s97 = scalar_select %p94, %s95, %s96
      %p100 = pneg %p94
      %p101 = scmp.eq.s32.totalorder %s17, 1
      %p102 = por %p100, %p101
      %p103 = scmp.ne.s32.totalorder %s95, %s98
      %p104 = scmp.eq.s32.totalorder %s17, 0
      %p105 = por %p103, %p104
      %p106 = scmp.ne.s32.totalorder %s95, %s98
      %p107 = scmp.eq.s32.totalorder %s22, 1
      %p108 = por %p106, %p107
      %p109 = scmp.ne.s32.totalorder %s98, %s99
      %p110 = scmp.eq.s32.totalorder %s22, 0
      %p111 = por %p109, %p110
      %p112 = scmp.ne.s32.totalorder %s98, %s99
      %p113 = scmp.eq.s32.totalorder %s23, 1
      %p114 = por %p112, %p113
      %p116 = scmp.ne.s32.totalorder %s99, %s115
      %p117 = scmp.eq.s32.totalorder %s23, 0
      %p118 = por %p116, %p117
      %p119 = scmp.le.s32.totalorder 1, %s17
      %p120 = scmp.lt.s32.totalorder %s17, 3
      %p121 = pnand %p119, %p120
      %p122 = pneg %p121
      // Predicated region
      $region9: #{tpu_custom_call.1} parent=5 // pred_check
        _
      $region10: #{tpu_custom_call.1} parent=5 // pred_check_branch
        %124 = sbr.rel (%p121) target = $region12
      $region11: #{tpu_custom_call.1} parent=5 // pred_region
        %s125 = ssub.s32 %s17, 1
      $region12: #{tpu_custom_call.1} parent=5 // pred_fallthru
        _
      %p126 = scmp.lt.s32.totalorder %s17, 2
      // Predicated region
      $region13: #{tpu_custom_call.1} parent=5 // pred_check
        %p127 = pneg %p126
      $region14: #{tpu_custom_call.1} parent=5 // pred_check_branch
        %129 = sbr.rel (%p127) target = $region16
      $region15: #{tpu_custom_call.1} parent=5 // pred_region
        // Predicated region
        $region17: #{tpu_custom_call.1} parent=15 // pred_check
          %p130 = pneg %p51
        $region18: #{tpu_custom_call.1} parent=15 // pred_check_branch
          %132 = sbr.rel (%p130) target = $region20
        $region19: #{tpu_custom_call.1} parent=15 // pred_region
          %s133 = sand.u32 %s41, 1
          %s134 = scalar_lea.sflag [#allocation3], %s133
          %s135 = sand.u32 %s41, 1
          %s136 = smul.addr %s135, 8
          %s137 = scalar_lea.vmem [#allocation2], %s136
          %s138 = sadd.s32 %s24, %s25
          %140 = vsyncadd %s134, 0
          %s141 = smul.addr %s138, 8
          %s142 = scalar_lea.hbm %s0, %s141
          %s144 = sshll.u32 %s142, 4
          %s145 = int_to_ptr.hbm [resolvable:$true] %s144
          %s146 = sshll.u32 %s137, 4
          %s147 = int_to_ptr.vmem [resolvable:$true] %s146
          %149 = dma.hbm_to_vmem [thread:$0]  %s145, 128, %s147, %s134
        $region20: #{tpu_custom_call.1} parent=15 // pred_fallthru
          _
        // Predicated region
        $region21: #{tpu_custom_call.1} parent=15 // pred_check
          %p150 = pneg %p79
        $region22: #{tpu_custom_call.1} parent=15 // pred_check_branch
          %152 = sbr.rel (%p150) target = $region24
        $region23: #{tpu_custom_call.1} parent=15 // pred_region
          %s153 = sand.u32 %s69, 1
          %s154 = scalar_lea.sflag [#allocation6], %s153
          %s155 = sand.u32 %s69, 1
          %s156 = smul.addr %s155, 8
          %s157 = scalar_lea.vmem [#allocation5], %s156
          %s158 = sadd.s32 %s24, %s25
          %160 = vsyncadd %s154, 0
          %s161 = smul.addr %s158, 8
          %s162 = scalar_lea.hbm %s1, %s161
          %s164 = sshll.u32 %s162, 4
          %s165 = int_to_ptr.hbm [resolvable:$true] %s164
          %s166 = sshll.u32 %s157, 4
          %s167 = int_to_ptr.vmem [resolvable:$true] %s166
          %169 = dma.hbm_to_vmem [thread:$0]  %s165, 128, %s167, %s154
        $region24: #{tpu_custom_call.1} parent=15 // pred_fallthru
          _
      $region16: #{tpu_custom_call.1} parent=5 // pred_fallthru
        _
      %p170 = scmp.le.s32.totalorder 1, %s17
      %p171 = scmp.lt.s32.totalorder %s17, 3
      %p172 = pnand %p170, %p171
      %p173 = pneg %p172
      // Predicated region
      $region25: #{tpu_custom_call.1} parent=5 // pred_check
        _
      $region26: #{tpu_custom_call.1} parent=5 // pred_check_branch
        %175 = sbr.rel (%p172) target = $region28
      $region27: #{tpu_custom_call.1} parent=5 // pred_region
        %s176 = ssub.s32 %s17, 1
        %s177 = sand.u32 %s44, 1
        %s178 = scalar_lea.sflag [#allocation3], %s177
        %s179 = sand.u32 %s44, 1
        %s180 = smul.addr %s179, 8
        %s181 = scalar_lea.vmem [#allocation2], %s180
        // Predicated region
        $region29: #{tpu_custom_call.1} parent=27 // pred_check
          %p182 = pneg %p57
        $region30: #{tpu_custom_call.1} parent=27 // pred_check_branch
          %184 = sbr.rel (%p182) target = $region32
        $region31: #{tpu_custom_call.1} parent=27 // pred_region
          %186 = dma.done %s178, 128
        $region32: #{tpu_custom_call.1} parent=27 // pred_fallthru
          _
        %s187 = sand.u32 %s72, 1
        %s188 = scalar_lea.sflag [#allocation6], %s187
        %s189 = sand.u32 %s72, 1
        %s190 = smul.addr %s189, 8
        %s191 = scalar_lea.vmem [#allocation5], %s190
        // Predicated region
        $region33: #{tpu_custom_call.1} parent=27 // pred_check
          %p192 = pneg %p85
        $region34: #{tpu_custom_call.1} parent=27 // pred_check_branch
          %194 = sbr.rel (%p192) target = $region36
        $region35: #{tpu_custom_call.1} parent=27 // pred_region
          %196 = dma.done %s188, 128
        $region36: #{tpu_custom_call.1} parent=27 // pred_fallthru
          _
        %s197 = sand.u32 %s44, 1
        %s198 = scalar_lea.sflag [#allocation3], %s197
        %s199 = sand.u32 %s44, 1
        %s200 = smul.addr %s199, 8
        %s201 = scalar_lea.vmem [#allocation2], %s200
        %p202 = pneg %p57
        %p203 = pneg %p54
        %s204 = sand.u32 %s72, 1
        %s205 = scalar_lea.sflag [#allocation6], %s204
        %s206 = sand.u32 %s72, 1
        %s207 = smul.addr %s206, 8
        %s208 = scalar_lea.vmem [#allocation5], %s207
        %p209 = pneg %p85
        %p210 = pneg %p82
        %p211 = pneg %p111
        %p212 = pneg %p108
        %s213 = sand.u32 %s98, 1
        %s214 = scalar_lea.sflag [#allocation4], %s213
        %s215 = sand.u32 %s98, 1
        %s216 = smul.addr %s215, 24
        %s217 = scalar_lea.vmem [#allocation7], %s216
        %s218 = sadd.s32 %s26, %s27
        %s219 = sadd.s32 %s26, %s27
        %p220 = scmp.eq.s32.totalorder %s27, 0
        // Predicated region
        $region37: #{tpu_custom_call.1} parent=27 // pred_check
          %p221 = pneg %p220
        $region38: #{tpu_custom_call.1} parent=27 // pred_check_branch
          %223 = sbr.rel (%p221) target = $region40
        $region39: #{tpu_custom_call.1} parent=27 // pred_region
          %224 = vst [vmem:[%s217] sm:$0xff] 0.0
          %225 = vst [vmem:[%s217 + $0x8] sm:$0xff] 0.0
          %226 = vst [vmem:[%s217 + $0x10] sm:$0xff] 0.0
        $region40: #{tpu_custom_call.1} parent=27 // pred_fallthru
          _
        %v227 = vld [vmem:[%s181] sm:$0xff]
        %v228 = vld [vmem:[%s191] sm:$0xff]
        %v229 = vand.u32 2147483647, %v227
        %v230 = vsub.f32 0.0, %v229
        %v231 = vmul.f32 %v230, 1.442695
        %v232 = vpow.pop %v231
        %v233 = vmax.f32 %v227, 0.0
        %v234 = vmul.f32 %v227, %v228
        %v235 = vsub.f32 %v233, %v234
        %v236 = vadd.f32 %v232, 1.0
        %v237 = vlog2.pop %v236
        %v238 = vmul.f32 %v237, 0.6931472
        %v239 = vmul.f32 -0.5, %v232
        %v240 = vadd.f32 %v239, 1.0
        %v241 = vmul.f32 %v240, %v232
        %v242 = vand.u32 2147483647, %v232
        %vm243 = vcmp.lt.f32.partialorder %v242, 0.0004427343
        %v244 = vsel %vm243, %v241, %v238
        %v245 = vadd.f32 %v235, %v244
        %vm246 = vcmp.ge.f32.partialorder %v227, 0.0
        %v247 = vsel %vm246, 1.0, %v232
        %v248 = vadd.f32 %v232, 1.0
        %v249 = vrcp.pop %v248
        %v250 = vmul.f32 %v248, %v249
        %v251 = vsub.f32 1.0, %v250
        %v252 = vmul.f32 %v249, %v251
        %v253 = vadd.f32 %v249, %v252
        %vm254 = vweird.f32 %v248
        %vm255 = vweird.f32 %v249
        %vm256 = vmor %vm254, %vm255
        %v257 = vsel %vm256, %v249, %v253
        %v258 = vand.u32 2147483647, %v248
        %vm259 = vcmp.eq.f32.partialorder %v258, 8.507059e+37
        %v260 = vand.u32 %v248, 2147483648
        %v261 = vor.u32 1.1754944e-38, %v260
        %v262 = vsel %vm259, %v261, %v257
        %v263 = vmul.f32 %v247, %v262
        %v264 = vld [vmem:[%s217] sm:$0xff]
        %v265 = vadd.f32 %v245, 0.0
        %v266 = vadd.f32 %v264, %v265
        %267 = vst [vmem:[%s217] sm:$0xff] %v266
        %s268 = scalar_lea.vmem %s217, 8 [#allocation7]
        %v269 = vld [vmem:[%s268] sm:$0xff]
        %v270 = vmul.f32 %v263, %v228
        %v271 = vadd.f32 %v270, 0.0
        %v272 = vadd.f32 %v269, %v271
        %273 = vst [vmem:[%s268] sm:$0xff] %v272
        %s274 = scalar_lea.vmem %s217, 16 [#allocation7]
        %v275 = vld [vmem:[%s274] sm:$0xff]
        %v276 = vadd.f32 %v263, %v228
        %v277 = vadd.f32 %v276, 0.0
        %v278 = vadd.f32 %v275, %v277
        %279 = vst [vmem:[%s274] sm:$0xff] %v278
        %s280 = sand.u32 %s98, 1
        %s281 = scalar_lea.sflag [#allocation4], %s280
        %s282 = sand.u32 %s98, 1
        %s283 = smul.addr %s282, 24
        %s284 = scalar_lea.vmem [#allocation7], %s283
        // Predicated region
        $region41: #{tpu_custom_call.1} parent=27 // pred_check
          %p285 = pneg %p108
        $region42: #{tpu_custom_call.1} parent=27 // pred_check_branch
          %287 = sbr.rel (%p285) target = $region44
        $region43: #{tpu_custom_call.1} parent=27 // pred_region
          %289 = vsyncadd %s281, 0
          %s290 = smul.addr %s26, 3
          %s291 = smul.addr %s290, 8
          %s292 = scalar_lea.hbm %s2, %s291
          %s293 = sshll.u32 %s284, 4
          %s294 = int_to_ptr.vmem [resolvable:$true] %s293
          %s295 = sshll.u32 %s292, 4
          %s296 = int_to_ptr.hbm [resolvable:$true] %s295
          %301 = dma.vmem_to_hbm [thread:$0]  %s294, 384, %s296, %s281, 128, 128, 8
        $region44: #{tpu_custom_call.1} parent=27 // pred_fallthru
          _
      $region28: #{tpu_custom_call.1} parent=5 // pred_fallthru
        _
      %p302 = scmp.le.s32.totalorder 2, %s17
      // Predicated region
      $region45: #{tpu_custom_call.1} parent=5 // pred_check
        %p303 = pneg %p302
      $region46: #{tpu_custom_call.1} parent=5 // pred_check_branch
        %305 = sbr.rel (%p303) target = $region48
      $region47: #{tpu_custom_call.1} parent=5 // pred_region
        %s306 = ssub.s32 %s17, 2
        // Predicated region
        $region49: #{tpu_custom_call.1} parent=47 // pred_check
          %p307 = pneg %p114
        $region50: #{tpu_custom_call.1} parent=47 // pred_check_branch
          %309 = sbr.rel (%p307) target = $region52
        $region51: #{tpu_custom_call.1} parent=47 // pred_region
          %s310 = sand.u32 %s99, 1
          %s311 = scalar_lea.sflag [#allocation4], %s310
          %s312 = sand.u32 %s99, 1
          %s313 = smul.addr %s312, 24
          %s314 = scalar_lea.vmem [#allocation7], %s313
          %316 = dma.done %s311, 384
        $region52: #{tpu_custom_call.1} parent=47 // pred_fallthru
          _
      $region48: #{tpu_custom_call.1} parent=5 // pred_fallthru
        _
    $region6: #{tpu_custom_call.1} parent=1 // loop_footer
      %s21 = sadd.s32 1, %s17
    $region7: #{tpu_custom_call.1} parent=1 // loop_footer_branch
      %16 = sbr.rel target = $region3
    $region8: #{tpu_custom_call.1} parent=1 // loop_exit
      _
    %317 = vsyncpa [#allocation3], 1
    %s318 = scalar_lea.sflag [#allocation3], 1
    %319 = vsyncpa %s318, 1
    %320 = vsyncpa [#allocation6], 1
    %s321 = scalar_lea.sflag [#allocation6], 1
    %322 = vsyncpa %s321, 1
    %323 = vsyncpa [#allocation4], 1
    %s324 = scalar_lea.sflag [#allocation4], 1
    %325 = vsyncpa %s324, 1

</llo_original>
